<compile_context>
chip_gen: v7x
topology: tpu7x:2x2x1
jax: 0.10.0
libtpu: 0.0.40
codegen_flags: <defaults>
</compile_context>

<pallas_src>
import functools
import math

import jax
import jax.numpy as jnp
from jax.experimental import pallas as pl
from jax.experimental.pallas import tpu as pltpu


def _bdconv_kernel(x_ref, w_ref, b_ref, o_ref, col_ref, *,
                   K, Wp, C, tile_rows, n_chunks):
    """One batch element per grid step.

    x_ref  : (1, C, Lflat)          zero-padded, spatially-flattened input
    w_ref  : (Cout, K*K*C)          fused block-diagonal filter (taps major)
    b_ref  : (Cout, 1)              fused bias (f32)
    o_ref  : (1, Cout, H*Wp)        lane-dense flattened output (padded width)
    col_ref: (K*K*C, tile_rows*Wp)  im2col VMEM scratch
    """
    P = tile_rows * Wp                      # flattened output positions / chunk
    for c in range(n_chunks):               # static unroll (n_chunks==1 here)
        base = c * P
        # ---- im2col: one contiguous lane-offset slice per tap (no reshape) --
        for dy in range(K):
            for dx in range(K):
                t = dy * K + dx
                off = base + dy * Wp + dx
                col_ref[t * C:(t + 1) * C, :] = x_ref[0, :, off:off + P]
        # ---- single fused matmul over all heads and all K*K taps ------------
        acc = jnp.dot(w_ref[...], col_ref[...],
                      preferred_element_type=jnp.float32)
        acc = acc + b_ref[...]               # (Cout, 1) broadcast over lanes
        o_ref[0, :, base:base + P] = acc.astype(o_ref.dtype)


def block_diagonal_conv2d(x, weights, bias, kernel_size, m, *,
                          compute_dtype=None):
    """Forward pass of BlockDiagonalConv2d_v2.

    x:       (B, C_in, H, W)   NCHW, channels interleaved as '(c m)'
    weights: (m, Cout_h, Cin_h, K, K)
    bias:    (m, Cout_h)
    returns: (B, Cout_h*m, H, W) NCHW, channels interleaved as '(c m)'
    """
    B, C, H, W = x.shape
    K = int(kernel_size)
    assert K % 2 == 1, "padding=K//2 preserves (H, W) only for odd kernel_size"
    pad = K // 2
    m_, Cout_h, Cin_h, K1, K2 = weights.shape
    assert m_ == m and K1 == K and K2 == K
    assert C == Cin_h * m, "in_channels must equal (in_channels//m) * m"
    Cout = Cout_h * m
    Hp, Wp = H + 2 * pad, W + 2 * pad

    cdt = jnp.dtype(compute_dtype) if compute_dtype is not None else x.dtype

    # --- fused block-diagonal weight / bias (tiny, built once in XLA) --------
    # W2d[cout*m + h, (dy*K + dx)*C + cin*m + h] = weights[h, cout, cin, dy, dx]
    w_t = jnp.transpose(weights, (3, 4, 2, 0, 1))      # (K, K, Cin_h, m, Cout_h)
    eye = jnp.eye(m, dtype=weights.dtype)
    w_bd = jnp.einsum('klcho,hm->klchom', w_t, eye)    # head-diagonal scatter
    w2d = w_bd.reshape(K * K * C, Cout).T.astype(cdt)  # (Cout, K*K*C)
    b2d = bias.T.reshape(Cout, 1).astype(jnp.float32)  # out index = cout*m + h

    # --- activation plumbing: pad + flatten only, NO transposes --------------
    # One extra zero row at the bottom keeps every tap's flattened window
    # in-bounds; flattening (H, W) makes each tap a contiguous slice.
    xp = jnp.pad(x, ((0, 0), (0, 0), (pad, pad + 1), (pad, pad)))
    Lflat = (Hp + 1) * Wp
    xflat = xp.reshape(B, C, Lflat).astype(cdt)

    # --- bound the im2col scratch so a grid step fits v7x's 64 MiB VMEM ------
    col_budget = 6 * 1024 * 1024
    bytes_per_row = K * K * C * Wp * jnp.dtype(cdt).itemsize
    tile_rows = 1
    for tr in range(H, 0, -1):
        if H % tr == 0 and tr * bytes_per_row <= col_budget:
            tile_rows = tr
            break
    n_chunks = H // tile_rows

    kernel = functools.partial(_bdconv_kernel, K=K, Wp=Wp, C=C,
                               tile_rows=tile_rows, n_chunks=n_chunks)

    out_flat = pl.pallas_call(
        kernel,
        out_shape=jax.ShapeDtypeStruct((B, Cout, H * Wp), x.dtype),
        grid_spec=pltpu.PrefetchScalarGridSpec(
            num_scalar_prefetch=0,
            grid=(B,),
            in_specs=[
                pl.BlockSpec((1, C, Lflat), lambda b: (b, 0, 0)),
                pl.BlockSpec((Cout, K * K * C), lambda b: (0, 0)),
                pl.BlockSpec((Cout, 1), lambda b: (0, 0)),
            ],
            out_specs=pl.BlockSpec((1, Cout, H * Wp), lambda b: (b, 0, 0)),
            scratch_shapes=[pltpu.VMEM((K * K * C, tile_rows * Wp), cdt)],
        ),
        compiler_params=pltpu.CompilerParams(
            dimension_semantics=("parallel",),
            vmem_limit_bytes=48 * 1024 * 1024,
        ),
    )(xflat, w2d, b2d)

    # Drop the scrap columns [W, Wp) of each padded-width row; the result is
    # already NCHW in the module's interleaved '(c m)' channel order.
    out = out_flat.reshape(B, Cout, H, Wp)[:, :, :, :W]
    return out


def _reference(x, weights, bias, kernel_size, m):
    """Pure-JAX reference (per-head conv2d, same rearranges as the PyTorch module)."""
    B, C, H, W = x.shape
    Cout_h, Cin_h = weights.shape[1], weights.shape[2]
    pad = kernel_size // 2
    x_heads = x.reshape(B, Cin_h, m, H, W).transpose(2, 0, 1, 3, 4)  # (m,B,Cin_h,H,W)
    outs = []
    for i in range(m):
        o = jax.lax.conv_general_dilated(
            x_heads[i], weights[i],
            window_strides=(1, 1),
            padding=[(pad, pad), (pad, pad)],
            dimension_numbers=("NCHW", "OIHW", "NCHW"))
        o = o + bias[i][None, :, None, None]
        outs.append(o)
    res = jnp.stack(outs, axis=0)                      # (m, B, Cout_h, H, W)
    return res.transpose(1, 2, 0, 3, 4).reshape(B, Cout_h * m, H, W)


if __name__ == "__main__":
    # Small shapes consistent with the module.
    in_channels = 4
    out_channels = 4
    kernel_size = 3
    m = 2
    B, H, W = 2, 16, 16
    Cout_h = out_channels // m
    Cin_h = in_channels // m

    key = jax.random.PRNGKey(0)
    k_x, k_w, k_b = jax.random.split(key, 3)

    # Deterministic parameter init, mimicking kaiming_uniform_(a=sqrt(5)) bounds.
    fan_in = Cout_h * Cin_h * kernel_size * kernel_size
    bound = 1.0 / math.sqrt(fan_in)
    weights = jax.random.uniform(
        k_w, (m, Cout_h, Cin_h, kernel_size, kernel_size),
        dtype=jnp.float32, minval=-bound, maxval=bound)
    bias = jax.random.uniform(
        k_b, (m, Cout_h), dtype=jnp.float32, minval=-bound, maxval=bound)

    x = jax.random.normal(k_x, (B, in_channels, H, W), dtype=jnp.float32)

    out = block_diagonal_conv2d(x, weights, bias, kernel_size, m)
    out = jax.block_until_ready(out)

    ref = jax.block_until_ready(_reference(x, weights, bias, kernel_size, m))
    assert out.shape == (B, out_channels, H, W), out.shape
    assert out.dtype == x.dtype, out.dtype
    assert jnp.allclose(out, ref, atol=2e-3, rtol=2e-3), \
        float(jnp.max(jnp.abs(out - ref)))

    print("KERNEL_OK")
</pallas_src>

<mosaic_0001>
module attributes {stable_mosaic.version = 11 : i64} {
  func.func @_bdconv_kernel(%arg0: i32, %arg1: memref<1x4x342xf32, #tpu.memory_space<vmem>>, %arg2: memref<4x36xf32, #tpu.memory_space<vmem>>, %arg3: memref<4x1xf32, #tpu.memory_space<vmem>>, %arg4: memref<1x4x288xf32, #tpu.memory_space<vmem>>, %arg5: memref<36x288xf32, #tpu.memory_space<vmem>>) attributes {dimension_semantics = [#tpu.dimension_semantics<parallel>], iteration_bounds = array<i64: 2>, scalar_prefetch = 0 : i64, scratch_operands = 1 : i64, tpu.core_type = #tpu.core_type<tc>, window_params = [{transform_indices = @transform_0, window_bounds = array<i64: 1, 4, 342>}, {pipeline_mode = #tpu.pipeline_mode<synchronous>, transform_indices = @transform_1, window_bounds = array<i64: 4, 36>}, {pipeline_mode = #tpu.pipeline_mode<synchronous>, transform_indices = @transform_2, window_bounds = array<i64: 4, 1>}, {transform_indices = @transform_3, window_bounds = array<i64: 1, 4, 288>}]} {
    %c0 = arith.constant 0 : index
    %c0_0 = arith.constant 0 : index
    %c0_1 = arith.constant 0 : index
    %0 = vector.load %arg1[%c0, %c0_0, %c0_1] : memref<1x4x342xf32, #tpu.memory_space<vmem>>, vector<1x4x288xf32>
    %1 = vector.shape_cast %0 : vector<1x4x288xf32> to vector<4x288xf32>
    %c0_2 = arith.constant 0 : index
    %c0_3 = arith.constant 0 : index
    %2 = vector.load %arg5[%c0_2, %c0_3] : memref<36x288xf32, #tpu.memory_space<vmem>>, vector<4x288xf32>
    tpu.vector_store %arg5[%c0_2, %c0_3], %1 {strides = array<i32>} : memref<36x288xf32, #tpu.memory_space<vmem>>, vector<4x288xf32>,
    %c0_4 = arith.constant 0 : index
    %c0_5 = arith.constant 0 : index
    %c1 = arith.constant 1 : index
    %3 = vector.load %arg1[%c0_4, %c0_5, %c1] : memref<1x4x342xf32, #tpu.memory_space<vmem>>, vector<1x4x288xf32>
    %4 = vector.shape_cast %3 : vector<1x4x288xf32> to vector<4x288xf32>
    %c4 = arith.constant 4 : index
    %c0_6 = arith.constant 0 : index
    %5 = vector.load %arg5[%c4, %c0_6] : memref<36x288xf32, #tpu.memory_space<vmem>>, vector<4x288xf32>
    tpu.vector_store %arg5[%c4, %c0_6], %4 {strides = array<i32>} : memref<36x288xf32, #tpu.memory_space<vmem>>, vector<4x288xf32>,
    %c0_7 = arith.constant 0 : index
    %c0_8 = arith.constant 0 : index
    %c2 = arith.constant 2 : index
    %6 = vector.load %arg1[%c0_7, %c0_8, %c2] : memref<1x4x342xf32, #tpu.memory_space<vmem>>, vector<1x4x288xf32>
    %7 = vector.shape_cast %6 : vector<1x4x288xf32> to vector<4x288xf32>
    %c8 = arith.constant 8 : index
    %c0_9 = arith.constant 0 : index
    %8 = vector.load %arg5[%c8, %c0_9] : memref<36x288xf32, #tpu.memory_space<vmem>>, vector<4x288xf32>
    tpu.vector_store %arg5[%c8, %c0_9], %7 {strides = array<i32>} : memref<36x288xf32, #tpu.memory_space<vmem>>, vector<4x288xf32>,
    %c0_10 = arith.constant 0 : index
    %c0_11 = arith.constant 0 : index
    %c18 = arith.constant 18 : index
    %9 = vector.load %arg1[%c0_10, %c0_11, %c18] : memref<1x4x342xf32, #tpu.memory_space<vmem>>, vector<1x4x288xf32>
    %10 = vector.shape_cast %9 : vector<1x4x288xf32> to vector<4x288xf32>
    %c12 = arith.constant 12 : index
    %c0_12 = arith.constant 0 : index
    %11 = vector.load %arg5[%c12, %c0_12] : memref<36x288xf32, #tpu.memory_space<vmem>>, vector<4x288xf32>
    tpu.vector_store %arg5[%c12, %c0_12], %10 {strides = array<i32>} : memref<36x288xf32, #tpu.memory_space<vmem>>, vector<4x288xf32>,
    %c0_13 = arith.constant 0 : index
    %c0_14 = arith.constant 0 : index
    %c19 = arith.constant 19 : index
    %12 = vector.load %arg1[%c0_13, %c0_14, %c19] : memref<1x4x342xf32, #tpu.memory_space<vmem>>, vector<1x4x288xf32>
    %13 = vector.shape_cast %12 : vector<1x4x288xf32> to vector<4x288xf32>
    %c16 = arith.constant 16 : index
    %c0_15 = arith.constant 0 : index
    %14 = vector.load %arg5[%c16, %c0_15] : memref<36x288xf32, #tpu.memory_space<vmem>>, vector<4x288xf32>
    tpu.vector_store %arg5[%c16, %c0_15], %13 {strides = array<i32>} : memref<36x288xf32, #tpu.memory_space<vmem>>, vector<4x288xf32>,
    %c0_16 = arith.constant 0 : index
    %c0_17 = arith.constant 0 : index
    %c20 = arith.constant 20 : index
    %15 = vector.load %arg1[%c0_16, %c0_17, %c20] : memref<1x4x342xf32, #tpu.memory_space<vmem>>, vector<1x4x288xf32>
    %16 = vector.shape_cast %15 : vector<1x4x288xf32> to vector<4x288xf32>
    %c20_18 = arith.constant 20 : index
    %c0_19 = arith.constant 0 : index
    %17 = vector.load %arg5[%c20_18, %c0_19] : memref<36x288xf32, #tpu.memory_space<vmem>>, vector<4x288xf32>
    tpu.vector_store %arg5[%c20_18, %c0_19], %16 {strides = array<i32>} : memref<36x288xf32, #tpu.memory_space<vmem>>, vector<4x288xf32>,
    %c0_20 = arith.constant 0 : index
    %c0_21 = arith.constant 0 : index
    %c36 = arith.constant 36 : index
    %18 = vector.load %arg1[%c0_20, %c0_21, %c36] : memref<1x4x342xf32, #tpu.memory_space<vmem>>, vector<1x4x288xf32>
    %19 = vector.shape_cast %18 : vector<1x4x288xf32> to vector<4x288xf32>
    %c24 = arith.constant 24 : index
    %c0_22 = arith.constant 0 : index
    %20 = vector.load %arg5[%c24, %c0_22] : memref<36x288xf32, #tpu.memory_space<vmem>>, vector<4x288xf32>
    tpu.vector_store %arg5[%c24, %c0_22], %19 {strides = array<i32>} : memref<36x288xf32, #tpu.memory_space<vmem>>, vector<4x288xf32>,
    %c0_23 = arith.constant 0 : index
    %c0_24 = arith.constant 0 : index
    %c37 = arith.constant 37 : index
    %21 = vector.load %arg1[%c0_23, %c0_24, %c37] : memref<1x4x342xf32, #tpu.memory_space<vmem>>, vector<1x4x288xf32>
    %22 = vector.shape_cast %21 : vector<1x4x288xf32> to vector<4x288xf32>
    %c28 = arith.constant 28 : index
    %c0_25 = arith.constant 0 : index
    %23 = vector.load %arg5[%c28, %c0_25] : memref<36x288xf32, #tpu.memory_space<vmem>>, vector<4x288xf32>
    tpu.vector_store %arg5[%c28, %c0_25], %22 {strides = array<i32>} : memref<36x288xf32, #tpu.memory_space<vmem>>, vector<4x288xf32>,
    %c0_26 = arith.constant 0 : index
    %c0_27 = arith.constant 0 : index
    %c38 = arith.constant 38 : index
    %24 = vector.load %arg1[%c0_26, %c0_27, %c38] : memref<1x4x342xf32, #tpu.memory_space<vmem>>, vector<1x4x288xf32>
    %25 = vector.shape_cast %24 : vector<1x4x288xf32> to vector<4x288xf32>
    %c32 = arith.constant 32 : index
    %c0_28 = arith.constant 0 : index
    %26 = vector.load %arg5[%c32, %c0_28] : memref<36x288xf32, #tpu.memory_space<vmem>>, vector<4x288xf32>
    tpu.vector_store %arg5[%c32, %c0_28], %25 {strides = array<i32>} : memref<36x288xf32, #tpu.memory_space<vmem>>, vector<4x288xf32>,
    %c0_29 = arith.constant 0 : index
    %c0_30 = arith.constant 0 : index
    %27 = vector.load %arg2[%c0_29, %c0_30] : memref<4x36xf32, #tpu.memory_space<vmem>>, vector<4x36xf32>
    %c0_31 = arith.constant 0 : index
    %c0_32 = arith.constant 0 : index
    %28 = vector.load %arg5[%c0_31, %c0_32] : memref<36x288xf32, #tpu.memory_space<vmem>>, vector<36x288xf32>
    %cst = arith.constant dense<0.000000e+00> : vector<4x288xf32>
    %29 = tpu.matmul %27, %28, %cst {dimension_numbers = #tpu.dot_dimension_numbers<[1], [0], [0], [1], [0, 0, 1, 1], [], []>} : vector<4x36xf32>, vector<36x288xf32>, vector<4x288xf32> -> vector<4x288xf32>
    %c0_33 = arith.constant 0 : index
    %c0_34 = arith.constant 0 : index
    %30 = vector.load %arg3[%c0_33, %c0_34] : memref<4x1xf32, #tpu.memory_space<vmem>>, vector<4x1xf32>
    %31 = vector.broadcast %30 : vector<4x1xf32> to vector<4x288xf32>
    %32 = arith.addf %29, %31 : vector<4x288xf32>
    %c0_35 = arith.constant 0 : index
    %c0_36 = arith.constant 0 : index
    %c0_37 = arith.constant 0 : index
    %33 = vector.load %arg4[%c0_35, %c0_36, %c0_37] : memref<1x4x288xf32, #tpu.memory_space<vmem>>, vector<1x4x288xf32>
    %34 = vector.shape_cast %33 : vector<1x4x288xf32> to vector<4x288xf32>
    %35 = vector.shape_cast %32 : vector<4x288xf32> to vector<1x4x288xf32>
    tpu.vector_store %arg4[%c0_35, %c0_36, %c0_37], %35 {strides = array<i32>} : memref<1x4x288xf32, #tpu.memory_space<vmem>>, vector<1x4x288xf32>,
    return
  }
  func.func @transform_0(%arg0: i32) -> (i32, i32, i32) {
    %c0_i32 = arith.constant 0 : i32
    %c0_i32_0 = arith.constant 0 : i32
    %c0_i32_1 = arith.constant 0 : i32
    return %arg0, %c0_i32, %c0_i32_0 : i32, i32, i32
  }
  func.func @transform_1(%arg0: i32) -> (i32, i32) {
    %c0_i32 = arith.constant 0 : i32
    %c0_i32_0 = arith.constant 0 : i32
    %c0_i32_1 = arith.constant 0 : i32
    return %c0_i32, %c0_i32_0 : i32, i32
  }
  func.func @transform_2(%arg0: i32) -> (i32, i32) {
    %c0_i32 = arith.constant 0 : i32
    %c0_i32_0 = arith.constant 0 : i32
    %c0_i32_1 = arith.constant 0 : i32
    return %c0_i32, %c0_i32_0 : i32, i32
  }
  func.func @transform_3(%arg0: i32) -> (i32, i32, i32) {
    %c0_i32 = arith.constant 0 : i32
    %c0_i32_0 = arith.constant 0 : i32
    %c0_i32_1 = arith.constant 0 : i32
    return %arg0, %c0_i32, %c0_i32_0 : i32, i32, i32
  }
}

</mosaic_0001>

<llo_original>
// kernel: tpu_custom_call.1
$region0: #{tpu_custom_call.1}
  #allocation0 [shape = 'u32[]', space=smem, size = 0x4, offset = 0x4, fixed_abs, tag = 'smem constant byte address 0x4 - core index']
  #allocation1 [shape = 'u32[144,128]{1,0:T(1,128)}', space=vmem, size = 0x12000, scoped, tag = 'internal scratch']
  #allocation2 [shape = 'f32[36,288]{1,0:T(8,128)}', space=vmem, size = 0xf000, scoped, tag = 'scratch operand']
  %s0 = inlined_call_operand.hbm [shape: f32[2,4,342], index: 0, kind: input, shape index: {}]
  %s1 = inlined_call_operand.vmem [shape: f32[4,36], index: 1, kind: input, shape index: {}]
  %s2 = inlined_call_operand.vmem [shape: f32[4,1], index: 2, kind: input, shape index: {}]
  %s3 = inlined_call_operand.hbm [shape: f32[2,4,288], index: 3, kind: output, shape index: {}]
  %s4 = sld [smem:[#allocation0]]
  $region49: #{tpu_custom_call.1} parent=0
    _
  %s6 = ssub.s32 1, %s4
  %s7 = scalar_select 0, %s6, %s4
  $region1: #{tpu_custom_call.1} parent=0
    #allocation3 [shape = 'u8[12288]{0}', space=vmem, size = 0x3000, scoped, tag = 'input window, operand 0']
    #allocation4 [shape = 's32[2]{0}', space=sflag, size = 0x8, scoped, tag = 'scoped memory for tpu_custom_call.1']
    #allocation5 [shape = 's32[2]{0}', space=sflag, size = 0x8, scoped, tag = 'scoped memory for tpu_custom_call.1']
    #allocation6 [shape = 'u8[12288]{0}', space=vmem, size = 0x3000, scoped, tag = 'output window, operand 0']
    %8 = vsyncpa [#allocation4], 0
    %s9 = scalar_lea.sflag [#allocation4], 1
    %10 = vsyncpa %s9, 0
    %11 = vsyncpa [#allocation5], 0
    %s12 = scalar_lea.sflag [#allocation5], 1
    %13 = vsyncpa %s12, 0
    loop: start=0, step=1, limit=4
    $region2: #{tpu_custom_call.1} parent=1 // loop_pre_header
      _
    $region3: #{tpu_custom_call.1} parent=1 // loop_header
      %s15 = sphi 0, %s19
      %p16 = scmp.ge.s32.totalorder %s15, 4
      %s25 = sphi 0, %s27
      %s28 = sphi 0, %s25
      %s29 = sphi 0, %s28
      %s45 = sphi 0, %s29
      %s49 = sphi 0, %s49
      %s51 = sphi 0, %s49
      %s52 = sphi 0, %s51
      %s66 = sphi 0, %s52
      %s70 = sphi 0, %s70
      %s72 = sphi 0, %s70
      %s73 = sphi 0, %s72
      %s87 = sphi 0, %s73
      %s93 = sphi 0, %s95
      %s96 = sphi 0, %s93
      %s97 = sphi 0, %s96
      %s113 = sphi 0, %s97
    $region4: #{tpu_custom_call.1} parent=1 // loop_header_branch
      %18 = sbr.rel (%p16) target = $region8
    $region5: #{tpu_custom_call.1} parent=1 // loop_body
      %s20 = ssub.s32 %s15, 1
      %s21 = ssub.s32 %s15, 2
      %s22 = sadd.s32 %s15, 1
      %s23 = ssub.s32 %s15, %s22
      %p24 = scmp.eq.s32.totalorder %s23, 0
      %s26 = sadd.s32 %s25, 1
      %s27 = scalar_select %p24, %s25, %s26
      %p30 = pneg %p24
      %p31 = scmp.eq.s32.totalorder %s15, 1
      %p32 = por %p30, %p31
      %p33 = scmp.ne.s32.totalorder %s25, %s28
      %p34 = scmp.eq.s32.totalorder %s15, 0
      %p35 = por %p33, %p34
      %p36 = scmp.ne.s32.totalorder %s25, %s28
      %p37 = scmp.eq.s32.totalorder %s20, 1
      %p38 = por %p36, %p37
      %p39 = scmp.ne.s32.totalorder %s28, %s29
      %p40 = scmp.eq.s32.totalorder %s20, 0
      %p41 = por %p39, %p40
      %p42 = scmp.ne.s32.totalorder %s28, %s29
      %p43 = scmp.eq.s32.totalorder %s21, 1
      %p44 = por %p42, %p43
      %p46 = scmp.ne.s32.totalorder %s29, %s45
      %p47 = scmp.eq.s32.totalorder %s21, 0
      %p48 = por %p46, %p47
      %s50 = sadd.s32 %s49, 1
      %p53 = scmp.eq.s32.totalorder %s15, 1
      %p54 = scmp.ne.s32.totalorder %s49, %s51
      %p55 = scmp.eq.s32.totalorder %s15, 0
      %p56 = por %p54, %p55
      %p57 = scmp.ne.s32.totalorder %s49, %s51
      %p58 = scmp.eq.s32.totalorder %s20, 1
      %p59 = por %p57, %p58
      %p60 = scmp.ne.s32.totalorder %s51, %s52
      %p61 = scmp.eq.s32.totalorder %s20, 0
      %p62 = por %p60, %p61
      %p63 = scmp.ne.s32.totalorder %s51, %s52
      %p64 = scmp.eq.s32.totalorder %s21, 1
      %p65 = por %p63, %p64
      %p67 = scmp.ne.s32.totalorder %s52, %s66
      %p68 = scmp.eq.s32.totalorder %s21, 0
      %p69 = por %p67, %p68
      %s71 = sadd.s32 %s70, 1
      %p74 = scmp.eq.s32.totalorder %s15, 1
      %p75 = scmp.ne.s32.totalorder %s70, %s72
      %p76 = scmp.eq.s32.totalorder %s15, 0
      %p77 = por %p75, %p76
      %p78 = scmp.ne.s32.totalorder %s70, %s72
      %p79 = scmp.eq.s32.totalorder %s20, 1
      %p80 = por %p78, %p79
      %p81 = scmp.ne.s32.totalorder %s72, %s73
      %p82 = scmp.eq.s32.totalorder %s20, 0
      %p83 = por %p81, %p82
      %p84 = scmp.ne.s32.totalorder %s72, %s73
      %p85 = scmp.eq.s32.totalorder %s21, 1
      %p86 = por %p84, %p85
      %p88 = scmp.ne.s32.totalorder %s73, %s87
      %p89 = scmp.eq.s32.totalorder %s21, 0
      %p90 = por %p88, %p89
      %s91 = ssub.s32 %s15, %s22
      %p92 = scmp.eq.s32.totalorder %s91, 0
      %s94 = sadd.s32 %s93, 1
      %s95 = scalar_select %p92, %s93, %s94
      %p98 = pneg %p92
      %p99 = scmp.eq.s32.totalorder %s15, 1
      %p100 = por %p98, %p99
      %p101 = scmp.ne.s32.totalorder %s93, %s96
      %p102 = scmp.eq.s32.totalorder %s15, 0
      %p103 = por %p101, %p102
      %p104 = scmp.ne.s32.totalorder %s93, %s96
      %p105 = scmp.eq.s32.totalorder %s20, 1
      %p106 = por %p104, %p105
      %p107 = scmp.ne.s32.totalorder %s96, %s97
      %p108 = scmp.eq.s32.totalorder %s20, 0
      %p109 = por %p107, %p108
      %p110 = scmp.ne.s32.totalorder %s96, %s97
      %p111 = scmp.eq.s32.totalorder %s21, 1
      %p112 = por %p110, %p111
      %p114 = scmp.ne.s32.totalorder %s97, %s113
      %p115 = scmp.eq.s32.totalorder %s21, 0
      %p116 = por %p114, %p115
      %p117 = scmp.le.s32.totalorder 1, %s15
      %p118 = scmp.lt.s32.totalorder %s15, 3
      %p119 = pnand %p117, %p118
      %p120 = pneg %p119
      // Predicated region
      $region9: #{tpu_custom_call.1} parent=5 // pred_check
        _
      $region10: #{tpu_custom_call.1} parent=5 // pred_check_branch
        %122 = sbr.rel (%p119) target = $region12
      $region11: #{tpu_custom_call.1} parent=5 // pred_region
        %s123 = ssub.s32 %s15, 1
        // Predicated region
        $region13: #{tpu_custom_call.1} parent=11 // pred_check
          %p124 = pneg %p62
        $region14: #{tpu_custom_call.1} parent=11 // pred_check_branch
          %126 = sbr.rel (%p124) target = $region16
        $region15: #{tpu_custom_call.1} parent=11 // pred_region
          _
        $region16: #{tpu_custom_call.1} parent=11 // pred_fallthru
          _
        // Predicated region
        $region17: #{tpu_custom_call.1} parent=11 // pred_check
          %p127 = pneg %p83
        $region18: #{tpu_custom_call.1} parent=11 // pred_check_branch
          %129 = sbr.rel (%p127) target = $region20
        $region19: #{tpu_custom_call.1} parent=11 // pred_region
          _
        $region20: #{tpu_custom_call.1} parent=11 // pred_fallthru
          _
      $region12: #{tpu_custom_call.1} parent=5 // pred_fallthru
        _
      %p130 = scmp.lt.s32.totalorder %s15, 2
      // Predicated region
      $region21: #{tpu_custom_call.1} parent=5 // pred_check
        %p131 = pneg %p130
      $region22: #{tpu_custom_call.1} parent=5 // pred_check_branch
        %133 = sbr.rel (%p131) target = $region24
      $region23: #{tpu_custom_call.1} parent=5 // pred_region
        // Predicated region
        $region25: #{tpu_custom_call.1} parent=23 // pred_check
          %p134 = pneg %p35
        $region26: #{tpu_custom_call.1} parent=23 // pred_check_branch
          %136 = sbr.rel (%p134) target = $region28
        $region27: #{tpu_custom_call.1} parent=23 // pred_region
          %s137 = sand.u32 %s25, 1
          %s138 = scalar_lea.sflag [#allocation4], %s137
          %s139 = sand.u32 %s25, 1
          %s140 = smul.addr %s139, 12
          %s141 = scalar_lea.vmem [#allocation3], %s140
          %s143 = ssub.s32 192, 192
          %144 = vsyncadd %s138, %s143
          %s145 = smul.addr %s15, 3
          %s146 = smul.addr %s145, 64
          %s147 = scalar_lea.hbm %s0, %s146
          %s149 = sshll.u32 %s141, 4
          %s150 = int_to_ptr.vmem [resolvable:$true] %s149
          %152 = dma.hbm_to_vmem [thread:$0]  %s147, 192, %s150, %s138
        $region28: #{tpu_custom_call.1} parent=23 // pred_fallthru
          _
      $region24: #{tpu_custom_call.1} parent=5 // pred_fallthru
        _
      %p153 = scmp.le.s32.totalorder 1, %s15
      %p154 = scmp.lt.s32.totalorder %s15, 3
      %p155 = pnand %p153, %p154
      %p156 = pneg %p155
      // Predicated region
      $region29: #{tpu_custom_call.1} parent=5 // pred_check
        _
      $region30: #{tpu_custom_call.1} parent=5 // pred_check_branch
        %158 = sbr.rel (%p155) target = $region32
      $region31: #{tpu_custom_call.1} parent=5 // pred_region
        %s159 = ssub.s32 %s15, 1
        %s160 = sand.u32 %s28, 1
        %s161 = scalar_lea.sflag [#allocation4], %s160
        %s162 = sand.u32 %s28, 1
        %s163 = smul.addr %s162, 12
        %s164 = scalar_lea.vmem [#allocation3], %s163
        // Predicated region
        $region33: #{tpu_custom_call.1} parent=31 // pred_check
          %p165 = pneg %p41
        $region34: #{tpu_custom_call.1} parent=31 // pred_check_branch
          %167 = sbr.rel (%p165) target = $region36
        $region35: #{tpu_custom_call.1} parent=31 // pred_region
          %168 = dma.done %s161, 192
        $region36: #{tpu_custom_call.1} parent=31 // pred_fallthru
          _
        %s169 = sand.u32 %s28, 1
        %s170 = scalar_lea.sflag [#allocation4], %s169
        %s171 = sand.u32 %s28, 1
        %s172 = smul.addr %s171, 12
        %s173 = scalar_lea.vmem [#allocation3], %s172
        %p174 = pneg %p41
        %p175 = pneg %p38
        %p176 = pneg %p62
        %p177 = pneg %p59
        %p178 = pneg %p83
        %p179 = pneg %p80
        %p180 = pneg %p109
        %p181 = pneg %p106
        %s182 = sand.u32 %s96, 1
        %s183 = scalar_lea.sflag [#allocation5], %s182
        %s184 = sand.u32 %s96, 1
        %s185 = smul.addr %s184, 12
        %s186 = scalar_lea.vmem [#allocation6], %s185
        %v187 = vld [vmem:[%s164] sm:$0xff]
        %v188 = vld [vmem:[%s164 + $0x8] sm:$0xf]
        %v190 = vcombine.high %v187, %v187
        %192 = vst [vmem:[#allocation2] sm:$0xf] %v187
        %193 = vst [vmem:[#allocation2 + $0x8] sm:$0xf] %v190
        %vm194 = vcmask 257024
        %195 = vst.msk [vmem:[#allocation2 + $0x10] sm:$0xf] %vm194, %v188
        %v196 = vld [vmem:[%s164] sm:$0xff]
        %v197 = vld [vmem:[%s164 + $0x8] sm:$0xf]
        %v200 = vcombine.low %v196, %v196
        %v201 = vcombine.low %v197, %v197
        %202 = vrot.lane.b32.xlu0 %v200, 127
        %v203 = vpop.permute.xlu0 %202
        %204 = vrot.lane.b32.xlu0 %v196, 127
        %v205 = vpop.permute.xlu0 %204
        %206 = vrot.lane.b32.xlu0 %v201, 127
        %v207 = vpop.permute.xlu0 %206
        %vm208 = vcmask 1039360
        %v209 = vsel %vm208, %v203, %v205
        %v210 = vsel %vm208, %v205, %v207
        %214 = vst [vmem:[#allocation2] sm:$0xf0] %v209
        %215 = vst [vmem:[#allocation2 + $0x8] sm:$0xf0] %v210
        %vm216 = vcmask 261124
        %217 = vst.msk [vmem:[#allocation2 + $0x10] sm:$0xf0] %vm216, %v207
        %v218 = vld [vmem:[%s164] sm:$0xff]
        %v219 = vld [vmem:[%s164 + $0x8] sm:$0xf]
        %v222 = vcombine.high %v218, %v218
        %223 = vrot.lane.b32.xlu0 %v218, 126
        %v224 = vpop.permute.xlu0 %223
        %225 = vrot.lane.b32.xlu0 %v222, 126
        %v226 = vpop.permute.xlu0 %225
        %227 = vrot.lane.b32.xlu0 %v219, 126
        %v228 = vpop.permute.xlu0 %227
        %vm229 = vcmask 1031168
        %v230 = vsel %vm229, %v224, %v226
        %v231 = vsel %vm229, %v226, %v228
        %235 = vst [vmem:[#allocation2 + $0x18] sm:$0xf] %v230
        %236 = vst [vmem:[#allocation2 + $0x20] sm:$0xf] %v231
        %237 = vst.msk [vmem:[#allocation2 + $0x28] sm:$0xf] %vm194, %v228
        %v238 = vld [vmem:[%s164] sm:$0xff]
        %v239 = vld [vmem:[%s164 + $0x8] sm:$0xf]
        %v242 = vcombine.low %v238, %v238
        %v243 = vcombine.low %v239, %v239
        %244 = vrot.lane.b32.xlu0 %v242, 110
        %v245 = vpop.permute.xlu0 %244
        %246 = vrot.lane.b32.xlu0 %v238, 110
        %v247 = vpop.permute.xlu0 %246
        %248 = vrot.lane.b32.xlu0 %v243, 110
        %v249 = vpop.permute.xlu0 %248
        %vm250 = vcmask 900096
        %v251 = vsel %vm250, %v245, %v247
        %v252 = vsel %vm250, %v247, %v249
        %256 = vst [vmem:[#allocation2 + $0x18] sm:$0xf0] %v251
        %257 = vst [vmem:[#allocation2 + $0x20] sm:$0xf0] %v252
        %258 = vst.msk [vmem:[#allocation2 + $0x28] sm:$0xf0] %vm216, %v249
        %v259 = vld [vmem:[%s164] sm:$0xff]
        %v260 = vld [vmem:[%s164 + $0x8] sm:$0xf]
        %v263 = vcombine.high %v259, %v259
        %264 = vrot.lane.b32.xlu0 %v259, 109
        %v265 = vpop.permute.xlu0 %264
        %266 = vrot.lane.b32.xlu0 %v263, 109
        %v267 = vpop.permute.xlu0 %266
        %268 = vrot.lane.b32.xlu0 %v260, 109
        %v269 = vpop.permute.xlu0 %268
        %vm270 = vcmask 891904
        %v271 = vsel %vm270, %v265, %v267
        %v272 = vsel %vm270, %v267, %v269
        %276 = vst [vmem:[#allocation2 + $0x30] sm:$0xf] %v271
        %277 = vst [vmem:[#allocation2 + $0x38] sm:$0xf] %v272
        %278 = vst.msk [vmem:[#allocation2 + $0x40] sm:$0xf] %vm194, %v269
        %v279 = vld [vmem:[%s164] sm:$0xff]
        %v280 = vld [vmem:[%s164 + $0x8] sm:$0xf]
        %v283 = vcombine.low %v279, %v279
        %v284 = vcombine.low %v280, %v280
        %285 = vrot.lane.b32.xlu0 %v283, 108
        %v286 = vpop.permute.xlu0 %285
        %287 = vrot.lane.b32.xlu0 %v279, 108
        %v288 = vpop.permute.xlu0 %287
        %289 = vrot.lane.b32.xlu0 %v284, 108
        %v290 = vpop.permute.xlu0 %289
        %vm291 = vcmask 883712
        %v292 = vsel %vm291, %v286, %v288
        %v293 = vsel %vm291, %v288, %v290
        %297 = vst [vmem:[#allocation2 + $0x30] sm:$0xf0] %v292
        %298 = vst [vmem:[#allocation2 + $0x38] sm:$0xf0] %v293
        %299 = vst.msk [vmem:[#allocation2 + $0x40] sm:$0xf0] %vm216, %v290
        %v300 = vld [vmem:[%s164] sm:$0xff]
        %v301 = vld [vmem:[%s164 + $0x8] sm:$0xf]
        %v304 = vcombine.high %v300, %v300
        %305 = vrot.lane.b32.xlu0 %v300, 92
        %v306 = vpop.permute.xlu0 %305
        %307 = vrot.lane.b32.xlu0 %v304, 92
        %v308 = vpop.permute.xlu0 %307
        %309 = vrot.lane.b32.xlu0 %v301, 92
        %v310 = vpop.permute.xlu0 %309
        %vm311 = vcmask 752640
        %v312 = vsel %vm311, %v306, %v308
        %v313 = vsel %vm311, %v308, %v310
        %317 = vst [vmem:[#allocation2 + $0x48] sm:$0xf] %v312
        %318 = vst [vmem:[#allocation2 + $0x50] sm:$0xf] %v313
        %319 = vst.msk [vmem:[#allocation2 + $0x58] sm:$0xf] %vm194, %v310
        %v320 = vld [vmem:[%s164] sm:$0xff]
        %v321 = vld [vmem:[%s164 + $0x8] sm:$0xf]
        %v324 = vcombine.low %v320, %v320
        %v325 = vcombine.low %v321, %v321
        %326 = vrot.lane.b32.xlu0 %v324, 91
        %v327 = vpop.permute.xlu0 %326
        %328 = vrot.lane.b32.xlu0 %v320, 91
        %v329 = vpop.permute.xlu0 %328
        %330 = vrot.lane.b32.xlu0 %v325, 91
        %v331 = vpop.permute.xlu0 %330
        %vm332 = vcmask 744448
        %v333 = vsel %vm332, %v327, %v329
        %v334 = vsel %vm332, %v329, %v331
        %338 = vst [vmem:[#allocation2 + $0x48] sm:$0xf0] %v333
        %339 = vst [vmem:[#allocation2 + $0x50] sm:$0xf0] %v334
        %340 = vst.msk [vmem:[#allocation2 + $0x58] sm:$0xf0] %vm216, %v331
        %v341 = vld [vmem:[%s164] sm:$0xff]
        %v342 = vld [vmem:[%s164 + $0x8] sm:$0xf]
        %v345 = vcombine.high %v341, %v341
        %346 = vrot.lane.b32.xlu0 %v341, 90
        %v347 = vpop.permute.xlu0 %346
        %348 = vrot.lane.b32.xlu0 %v345, 90
        %v349 = vpop.permute.xlu0 %348
        %350 = vrot.lane.b32.xlu0 %v342, 90
        %v351 = vpop.permute.xlu0 %350
        %vm352 = vcmask 736256
        %v353 = vsel %vm352, %v347, %v349
        %v354 = vsel %vm352, %v349, %v351
        %358 = vst [vmem:[#allocation2 + $0x60] sm:$0xf] %v353
        %359 = vst [vmem:[#allocation2 + $0x68] sm:$0xf] %v354
        %360 = vst.msk [vmem:[#allocation2 + $0x70] sm:$0xf] %vm194, %v351
        %v361 = vld [vmem:[%s1] sm:$0xf]
        %v362 = vld [vmem:[#allocation2] sm:$0xff]
        %v363 = vld [vmem:[#allocation2 + $0x8] sm:$0xff]
        %v364 = vld [vmem:[#allocation2 + $0x10] sm:$0xff]
        %v365 = vld [vmem:[#allocation2 + $0x18] sm:$0xff]
        %v366 = vld [vmem:[#allocation2 + $0x20] sm:$0xff]
        %v367 = vld [vmem:[#allocation2 + $0x28] sm:$0xff]
        %v368 = vld [vmem:[#allocation2 + $0x30] sm:$0xff]
        %v369 = vld [vmem:[#allocation2 + $0x38] sm:$0xff]
        %v370 = vld [vmem:[#allocation2 + $0x40] sm:$0xff]
        %v371 = vld [vmem:[#allocation2 + $0x48] sm:$0xff]
        %v372 = vld [vmem:[#allocation2 + $0x50] sm:$0xff]
        %v373 = vld [vmem:[#allocation2 + $0x58] sm:$0xff]
        %v374 = vld [vmem:[#allocation2 + $0x60] sm:$0xf]
        %v375 = vld [vmem:[#allocation2 + $0x68] sm:$0xf]
        %v376 = vld [vmem:[#allocation2 + $0x70] sm:$0xf]
        %v377 = vld [vmem:[%s2] sm:$0xf]
        %379 = vset.pattern.permute.xlu0 0
        %380 = vperm.xlu0 %379, %v377
        %v381 = vpop.permute.xlu0 %380
        %vm383 = vcmask 293888
        %v385 = vsel %vm383, %v361, 0
        %vm387 = vcmask 1043456
        %v389 = vsel %vm387, %v374, 0
        %v392 = vsel %vm387, %v375, 0
        %v395 = vsel %vm387, %v376, 0
        %397 = vmatprep.subr.mxu0 %v363
        %398 = vmatpush1.msra.mxu0 %v362
        %399 = vmatprep.subr.mxu0 %v366
        %400 = vmatpush1.msra.mxu0 %v365
        %401 = vmatprep.subr.mxu0 %v369
        %402 = vmatpush1.msra.mxu0 %v368
        %403 = vmatprep.subr.mxu0 %v372
        %404 = vmatpush1.msra.mxu0 %v371
        %405 = vmatprep.subr.mxu0 %v392
        %406 = vmatpush1.msra.mxu0 %v389
        %407 = vmatprep.subr.mxu0 0.0
        %408 = vmatpush1.msra.mxu0 0.0
        %409 = vmatprep.subr.mxu0 0.0
        %410 = vmatpush1.msra.mxu0 0.0
        %411 = vmatprep.subr.mxu0 0.0
        %412 = vmatpush1.msra.mxu0 0.0
        %413 = vmatprep.subr.mxu0 0.0
        %414 = vmatpush1.msra.mxu0 0.0
        %415 = vmatprep.subr.mxu0 0.0
        %416 = vmatpush1.msra.mxu0 0.0
        %417 = vmatprep.subr.mxu0 0.0
        %418 = vmatpush1.msra.mxu0 0.0
        %419 = vmatprep.subr.mxu0 0.0
        %420 = vmatpush1.msra.mxu0 0.0
        %421 = vmatprep.subr.mxu0 0.0
        %422 = vmatpush1.msra.mxu0 0.0
        %423 = vmatprep.subr.mxu0 0.0
        %424 = vmatpush1.msra.mxu0 0.0
        %425 = vmatprep.subr.mxu0 0.0
        %426 = vmatpush1.msra.mxu0 0.0
        %427 = vmatprep.subr.mxu0 0.0
        %428 = vmatpush1.msra.mxu0 0.0
        %429 = vmatprep.subr.mxu0 0.0
        %430 = vmatpush1.msra.mxu0 0.0
        %431 = vmatprep.subr.mxu0 0.0
        %432 = vmatpush1.msra.mxu0 0.0
        %433 = vmatprep.subr.mxu0 0.0
        %434 = vmatpush1.msra.mxu0 0.0
        %435 = vmatprep.subr.mxu0 0.0
        %436 = vmatpush1.msra.mxu0 0.0
        %437 = vmatprep.subr.mxu0 0.0
        %438 = vmatpush1.msra.mxu0 0.0
        %439 = vmatprep.subr.mxu0 0.0
        %440 = vmatpush1.msra.mxu0 0.0
        %441 = vmatprep.subr.mxu0 0.0
        %442 = vmatpush1.msra.mxu0 0.0
        %443 = vmatprep.subr.mxu0 0.0
        %444 = vmatpush1.msra.mxu0 0.0
        %445 = vmatprep.subr.mxu0 0.0
        %446 = vmatpush1.msra.mxu0 0.0
        %447 = vmatprep.subr.mxu0 0.0
        %448 = vmatpush1.msra.mxu0 0.0
        %449 = vmatprep.subr.mxu0 0.0
        %450 = vmatpush1.msra.mxu0 0.0
        %451 = vmatprep.subr.mxu0 0.0
        %452 = vmatpush1.msra.mxu0 0.0
        %453 = vmatprep.subr.mxu0 0.0
        %454 = vmatpush1.msra.mxu0 0.0
        %455 = vmatprep.subr.mxu0 0.0
        %456 = vmatpush1.msra.mxu0 0.0
        %457 = vmatprep.subr.mxu0 0.0
        %458 = vmatpush1.msra.mxu0 0.0
        %459 = vmatprep.subr.mxu0 0.0
        %460 = vmatpush1.msra.mxu0 0.0
        %461 = vmatprep.mubr.f32.mxu0 0.0
        %462 = vmatmul.mubr.f32.gmra.mrb[0].mxu0 %v385
        %v463 = vpop.f32.mrb[0].mxu0
        %v464 = vadd.f32 %v381, %v463
        %v465 = vpop.f32.mrb[0].mxu0
        %v466 = vadd.f32 %v381, %v465
        %467 = vdwg.mxu0
        %468 = vmatprep.subr.mxu0 0.0
        %469 = vmatpush1.msra.mxu0 %v364
        %470 = vmatprep.subr.mxu0 0.0
        %471 = vmatpush1.msra.mxu0 %v367
        %472 = vmatprep.subr.mxu0 0.0
        %473 = vmatpush1.msra.mxu0 %v370
        %474 = vmatprep.subr.mxu0 0.0
        %475 = vmatpush1.msra.mxu0 %v373
        %476 = vmatprep.subr.mxu0 0.0
        %477 = vmatpush1.msra.mxu0 %v395
        %478 = vmatprep.subr.mxu0 0.0
        %479 = vmatpush1.msra.mxu0 0.0
        %480 = vmatprep.subr.mxu0 0.0
        %481 = vmatpush1.msra.mxu0 0.0
        %482 = vmatprep.subr.mxu0 0.0
        %483 = vmatpush1.msra.mxu0 0.0
        %484 = vmatprep.subr.mxu0 0.0
        %485 = vmatpush1.msra.mxu0 0.0
        %486 = vmatprep.subr.mxu0 0.0
        %487 = vmatpush1.msra.mxu0 0.0
        %488 = vmatprep.subr.mxu0 0.0
        %489 = vmatpush1.msra.mxu0 0.0
        %490 = vmatprep.subr.mxu0 0.0
        %491 = vmatpush1.msra.mxu0 0.0
        %492 = vmatprep.subr.mxu0 0.0
        %493 = vmatpush1.msra.mxu0 0.0
        %494 = vmatprep.subr.mxu0 0.0
        %495 = vmatpush1.msra.mxu0 0.0
        %496 = vmatprep.subr.mxu0 0.0
        %497 = vmatpush1.msra.mxu0 0.0
        %498 = vmatprep.subr.mxu0 0.0
        %499 = vmatpush1.msra.mxu0 0.0
        %500 = vmatprep.subr.mxu0 0.0
        %501 = vmatpush1.msra.mxu0 0.0
        %502 = vmatprep.subr.mxu0 0.0
        %503 = vmatpush1.msra.mxu0 0.0
        %504 = vmatprep.subr.mxu0 0.0
        %505 = vmatpush1.msra.mxu0 0.0
        %506 = vmatprep.subr.mxu0 0.0
        %507 = vmatpush1.msra.mxu0 0.0
        %508 = vmatprep.subr.mxu0 0.0
        %509 = vmatpush1.msra.mxu0 0.0
        %510 = vmatprep.subr.mxu0 0.0
        %511 = vmatpush1.msra.mxu0 0.0
        %512 = vmatprep.subr.mxu0 0.0
        %513 = vmatpush1.msra.mxu0 0.0
        %514 = vmatprep.subr.mxu0 0.0
        %515 = vmatpush1.msra.mxu0 0.0
        %516 = vmatprep.subr.mxu0 0.0
        %517 = vmatpush1.msra.mxu0 0.0
        %518 = vmatprep.subr.mxu0 0.0
        %519 = vmatpush1.msra.mxu0 0.0
        %520 = vmatprep.subr.mxu0 0.0
        %521 = vmatpush1.msra.mxu0 0.0
        %522 = vmatprep.subr.mxu0 0.0
        %523 = vmatpush1.msra.mxu0 0.0
        %524 = vmatprep.subr.mxu0 0.0
        %525 = vmatpush1.msra.mxu0 0.0
        %526 = vmatprep.subr.mxu0 0.0
        %527 = vmatpush1.msra.mxu0 0.0
        %528 = vmatprep.subr.mxu0 0.0
        %529 = vmatpush1.msra.mxu0 0.0
        %530 = vmatprep.subr.mxu0 0.0
        %531 = vmatpush1.msra.mxu0 0.0
        %532 = vmatprep.mubr.f32.mxu0 0.0
        %533 = vmatmul.mubr.f32.gmra.mrb[0].mxu0 %v385
        %v534 = vpop.f32.mrb[0].mxu0
        %v535 = vadd.f32 %v381, %v534
        %v536 = vpop.f32.mrb[0].mxu0
        %537 = vdwg.mxu0
        %v540 = vcombine.low %v464, %v466
        %542 = vst [vmem:[%s186] sm:$0xff] %v540
        %543 = vst.msk [vmem:[%s186 + $0x8] sm:$0xf] %vm194, %v535
        %s544 = sand.u32 %s96, 1
        %s545 = scalar_lea.sflag [#allocation5], %s544
        %s546 = sand.u32 %s96, 1
        %s547 = smul.addr %s546, 12
        %s548 = scalar_lea.vmem [#allocation6], %s547
        // Predicated region
        $region37: #{tpu_custom_call.1} parent=31 // pred_check
          %p549 = pneg %p106
        $region38: #{tpu_custom_call.1} parent=31 // pred_check_branch
          %551 = sbr.rel (%p549) target = $region40
        $region39: #{tpu_custom_call.1} parent=31 // pred_region
          %s553 = ssub.s32 192, 192
          %554 = vsyncadd %s545, %s553
          %s555 = smul.addr %s20, 3
          %s556 = smul.addr %s555, 64
          %s557 = scalar_lea.hbm %s3, %s556
          %s559 = sshll.u32 %s548, 4
          %s560 = int_to_ptr.vmem [resolvable:$true] %s559
          %562 = dma.vmem_to_hbm [thread:$0]  %s560, 192, %s557, %s545
        $region40: #{tpu_custom_call.1} parent=31 // pred_fallthru
          _
      $region32: #{tpu_custom_call.1} parent=5 // pred_fallthru
        _
      %p563 = scmp.le.s32.totalorder 2, %s15
      // Predicated region
      $region41: #{tpu_custom_call.1} parent=5 // pred_check
        %p564 = pneg %p563
      $region42: #{tpu_custom_call.1} parent=5 // pred_check_branch
        %566 = sbr.rel (%p564) target = $region44
      $region43: #{tpu_custom_call.1} parent=5 // pred_region
        %s567 = ssub.s32 %s15, 2
        // Predicated region
        $region45: #{tpu_custom_call.1} parent=43 // pred_check
          %p568 = pneg %p112
        $region46: #{tpu_custom_call.1} parent=43 // pred_check_branch
          %570 = sbr.rel (%p568) target = $region48
        $region47: #{tpu_custom_call.1} parent=43 // pred_region
          %s571 = sand.u32 %s97, 1
          %s572 = scalar_lea.sflag [#allocation5], %s571
          %s573 = sand.u32 %s97, 1
          %s574 = smul.addr %s573, 12
          %s575 = scalar_lea.vmem [#allocation6], %s574
          %576 = dma.done %s572, 192
        $region48: #{tpu_custom_call.1} parent=43 // pred_fallthru
          _
      $region44: #{tpu_custom_call.1} parent=5 // pred_fallthru
        _
    $region6: #{tpu_custom_call.1} parent=1 // loop_footer
      %s19 = sadd.s32 1, %s15
    $region7: #{tpu_custom_call.1} parent=1 // loop_footer_branch
      %14 = sbr.rel target = $region3
    $region8: #{tpu_custom_call.1} parent=1 // loop_exit
      _
    %577 = vsyncpa [#allocation4], 1
    %s578 = scalar_lea.sflag [#allocation4], 1
    %579 = vsyncpa %s578, 1
    %580 = vsyncpa [#allocation5], 1
    %s581 = scalar_lea.sflag [#allocation5], 1
    %582 = vsyncpa %s581, 1

</llo_original>
